<compile_context>
chip_gen: v6e
topology: v6e:2x2x1
jax: 0.10.0
libtpu: 0.0.40
codegen_flags: <defaults>
</compile_context>

<pallas_src>
import functools

import jax
import jax.numpy as jnp
from jax.experimental import pallas as pl
from jax.experimental.pallas import tpu as pltpu


def _round_up(x: int, m: int) -> int:
    return (x + m - 1) // m * m


def _erf_f32(z):
    """erf approximation (A&S 7.1.26), f32, max abs error 1.5e-7."""
    a1 = jnp.float32(0.254829592)
    a2 = jnp.float32(-0.284496736)
    a3 = jnp.float32(1.421413741)
    a4 = jnp.float32(-1.453152027)
    a5 = jnp.float32(1.061405429)
    p = jnp.float32(0.3275911)
    az = jnp.abs(z)
    t = jnp.float32(1.0) / (jnp.float32(1.0) + p * az)
    poly = ((((a5 * t + a4) * t + a3) * t + a2) * t + a1) * t
    e = jnp.float32(1.0) - poly * jnp.exp(-az * az)
    return jnp.where(z >= 0, e, -e)


def _ffn_kernel(x_ref, w1_ref, b1_ref, w2_ref, b2_ref, o_ref, acc_ref):
    """One (row_tile, d_ff_tile) step of gelu(x@W1+b1)@W2+b2 with f32 accum."""
    f = pl.program_id(1)

    @pl.when(f == 0)
    def _init():
        # Seed the accumulator with b2 (folds the second bias into the init).
        acc_ref[...] = jnp.broadcast_to(
            b2_ref[...].astype(jnp.float32), acc_ref.shape)

    # First linear chunk on the MXU, f32 accumulation.
    h = jnp.dot(x_ref[...], w1_ref[...], preferred_element_type=jnp.float32)
    h = h + b1_ref[...].astype(jnp.float32)          # (tm, tf), f32

    # Exact (erf) GELU, matching torch.nn.functional.gelu default.
    h = jnp.float32(0.5) * h * (
        jnp.float32(1.0) + _erf_f32(h * jnp.float32(0.7071067811865476)))

    # Dropout: eval mode => identity.

    # Second linear chunk: accumulate this d_ff slice into the output tile.
    acc_ref[...] += jnp.dot(h.astype(w2_ref.dtype), w2_ref[...],
                            preferred_element_type=jnp.float32)

    @pl.when(f == pl.num_programs(1) - 1)
    def _finalize():
        o_ref[...] = acc_ref[...].astype(o_ref.dtype)


@functools.partial(jax.jit, static_argnames=("row_tile", "ff_tile"))
def ffn_forward(x, w1, b1, w2, b2, *, row_tile=256, ff_tile=512):
    """x: (B, S, d_model); w1: (d_model, d_ff); w2: (d_ff, d_model)."""
    B, S, d_model = x.shape
    d_ff = w1.shape[1]
    out_dtype = x.dtype
    compute_dtype = w1.dtype          # cast activations to the weight dtype

    M = B * S

    # --- tile sizes (MXU / vreg aligned) ---------------------------------
    tm = _round_up(min(row_tile, _round_up(M, 8)), 8)        # rows per step
    d_model_p = _round_up(d_model, 128)                      # lane-dense
    d_ff_p = _round_up(d_ff, 128)
    tf = _round_up(min(ff_tile, d_ff_p), 128)                # d_ff per step
    d_ff_p = _round_up(d_ff_p, tf)                           # divisible by tf
    M_p = _round_up(M, tm)

    # --- zero-pad operands (exact: padded lanes contribute 0) ------------
    x2 = x.reshape(M, d_model).astype(compute_dtype)
    x_p = jnp.pad(x2, ((0, M_p - M), (0, d_model_p - d_model)))
    w1_p = jnp.pad(w1, ((0, d_model_p - d_model), (0, d_ff_p - d_ff)))
    b1_p = jnp.pad(b1, (0, d_ff_p - d_ff)).reshape(1, d_ff_p)
    w2_p = jnp.pad(w2, ((0, d_ff_p - d_ff), (0, d_model_p - d_model)))
    b2_p = jnp.pad(b2, (0, d_model_p - d_model)).reshape(1, d_model_p)

    grid = (M_p // tm, d_ff_p // tf)

    # --- advisory cost estimate for XLA's scheduler ----------------------
    itemsize = jnp.dtype(compute_dtype).itemsize
    flops = int(4 * M_p * d_model_p * d_ff_p)             # two matmuls
    transcendentals = int(M_p * d_ff_p)                   # exp per activation
    bytes_accessed = int(
        x_p.size * itemsize + w1_p.size * itemsize + w2_p.size * itemsize
        + b1_p.size * itemsize + b2_p.size * itemsize
        + M_p * d_model_p * jnp.dtype(out_dtype).itemsize)

    out_p = pl.pallas_call(
        _ffn_kernel,
        out_shape=jax.ShapeDtypeStruct((M_p, d_model_p), out_dtype),
        grid_spec=pltpu.PrefetchScalarGridSpec(
            num_scalar_prefetch=0,
            grid=grid,
            in_specs=[
                pl.BlockSpec((tm, d_model_p), lambda i, f: (i, 0)),  # x rows
                pl.BlockSpec((d_model_p, tf), lambda i, f: (0, f)),  # W1 chunk
                pl.BlockSpec((1, tf),         lambda i, f: (0, f)),  # b1 chunk
                pl.BlockSpec((tf, d_model_p), lambda i, f: (f, 0)),  # W2 chunk
                pl.BlockSpec((1, d_model_p),  lambda i, f: (0, 0)),  # b2
            ],
            out_specs=pl.BlockSpec((tm, d_model_p), lambda i, f: (i, 0)),
            scratch_shapes=[pltpu.VMEM((tm, d_model_p), jnp.float32)],
        ),
        compiler_params=pltpu.CompilerParams(
            dimension_semantics=("parallel", "arbitrary"),
            vmem_limit_bytes=48 * 1024 * 1024,
        ),
        cost_estimate=pl.CostEstimate(
            flops=flops,
            transcendentals=transcendentals,
            bytes_accessed=bytes_accessed),
    )(x_p, w1_p, b1_p, w2_p, b2_p)

    return out_p[:M, :d_model].reshape(B, S, d_model)


def _reference_ffn(x, w1, b1, w2, b2):
    h = jnp.dot(x, w1) + b1
    h = jax.nn.gelu(h, approximate=False)
    return jnp.dot(h, w2) + b2


if __name__ == "__main__":
    # Small shapes consistent with the module: (batch, seq, d_model)
    B, S, d_model, d_ff = 2, 8, 32, 64

    key = jax.random.PRNGKey(0)
    kx, kw1, kb1, kw2, kb2 = jax.random.split(key, 5)

    x = jax.random.normal(kx, (B, S, d_model), dtype=jnp.float32)

    # Deterministic parameter init (Kaiming-uniform-ish scale like nn.Linear).
    lim1 = 1.0 / jnp.sqrt(d_model)
    lim2 = 1.0 / jnp.sqrt(d_ff)
    w1 = jax.random.uniform(kw1, (d_model, d_ff), jnp.float32, -lim1, lim1)
    b1 = jax.random.uniform(kb1, (d_ff,),         jnp.float32, -lim1, lim1)
    w2 = jax.random.uniform(kw2, (d_ff, d_model), jnp.float32, -lim2, lim2)
    b2 = jax.random.uniform(kb2, (d_model,),      jnp.float32, -lim2, lim2)

    ref = _reference_ffn(x, w1, b1, w2, b2)

    # f32 path.  Tolerance is sized for TPU MXU default-precision matmuls
    # (bf16-operand passes on both the XLA reference and the kernel); genuine
    # semantic errors (wrong activation / missing bias) deviate by O(0.1-1).
    out = ffn_forward(x, w1, b1, w2, b2)
    out = jax.block_until_ready(out)
    assert out.shape == (B, S, d_model)
    assert jnp.all(jnp.isfinite(out))
    assert jnp.allclose(out, ref, atol=2e-2, rtol=2e-2), "f32 mismatch vs reference"

    # bf16 weights/activations path (MXU-native), loose tolerance.
    out_bf16 = ffn_forward(
        x.astype(jnp.bfloat16), w1.astype(jnp.bfloat16), b1.astype(jnp.bfloat16),
        w2.astype(jnp.bfloat16), b2.astype(jnp.bfloat16))
    out_bf16 = jax.block_until_ready(out_bf16)
    assert out_bf16.shape == (B, S, d_model)
    assert jnp.all(jnp.isfinite(out_bf16.astype(jnp.float32)))
    assert jnp.allclose(out_bf16.astype(jnp.float32), ref, atol=2e-1, rtol=2e-1), \
        "bf16 mismatch vs reference"

    print("KERNEL_OK")
</pallas_src>

<mosaic_0001>
module attributes {stable_mosaic.version = 11 : i64} {
  func.func @_ffn_kernel(%arg0: i32, %arg1: i32, %arg2: memref<16x128xf32, #tpu.memory_space<vmem>>, %arg3: memref<128x128xf32, #tpu.memory_space<vmem>>, %arg4: memref<1x128xf32, #tpu.memory_space<vmem>>, %arg5: memref<128x128xf32, #tpu.memory_space<vmem>>, %arg6: memref<1x128xf32, #tpu.memory_space<vmem>>, %arg7: memref<16x128xf32, #tpu.memory_space<vmem>>, %arg8: memref<16x128xf32, #tpu.memory_space<vmem>>) attributes {dimension_semantics = [#tpu.dimension_semantics<parallel>, #tpu.dimension_semantics<arbitrary>], iteration_bounds = array<i64: 1, 1>, scalar_prefetch = 0 : i64, scratch_operands = 1 : i64, tpu.core_type = #tpu.core_type<tc>, window_params = [{transform_indices = @transform_0, window_bounds = array<i64: 16, 128>}, {transform_indices = @transform_1, window_bounds = array<i64: 128, 128>}, {transform_indices = @transform_2, window_bounds = array<i64: 1, 128>}, {transform_indices = @transform_3, window_bounds = array<i64: 128, 128>}, {pipeline_mode = #tpu.pipeline_mode<synchronous>, transform_indices = @transform_4, window_bounds = array<i64: 1, 128>}, {transform_indices = @transform_5, window_bounds = array<i64: 16, 128>}]} {
    %c0_i32 = arith.constant 0 : i32
    %0 = arith.cmpi eq, %arg1, %c0_i32 : i32
    %1 = arith.extui %0 : i1 to i32
    %c0_i32_0 = arith.constant 0 : i32
    %2 = arith.cmpi ne, %1, %c0_i32_0 : i32
    scf.if %2 {
      %c0_30 = arith.constant 0 : index
      %c0_31 = arith.constant 0 : index
      %57 = vector.load %arg6[%c0_30, %c0_31] : memref<1x128xf32, #tpu.memory_space<vmem>>, vector<1x128xf32>
      %58 = vector.shape_cast %57 : vector<1x128xf32> to vector<1x128xf32>
      %59 = vector.broadcast %58 : vector<1x128xf32> to vector<16x128xf32>
      %c0_32 = arith.constant 0 : index
      %c0_33 = arith.constant 0 : index
      %60 = vector.load %arg8[%c0_32, %c0_33] : memref<16x128xf32, #tpu.memory_space<vmem>>, vector<16x128xf32>
      tpu.vector_store %arg8[%c0_32, %c0_33], %59 {strides = array<i32>} : memref<16x128xf32, #tpu.memory_space<vmem>>, vector<16x128xf32>,
    } else {
    }
    %c0 = arith.constant 0 : index
    %c0_1 = arith.constant 0 : index
    %3 = vector.load %arg2[%c0, %c0_1] : memref<16x128xf32, #tpu.memory_space<vmem>>, vector<16x128xf32>
    %c0_2 = arith.constant 0 : index
    %c0_3 = arith.constant 0 : index
    %4 = vector.load %arg3[%c0_2, %c0_3] : memref<128x128xf32, #tpu.memory_space<vmem>>, vector<128x128xf32>
    %cst = arith.constant dense<0.000000e+00> : vector<16x128xf32>
    %5 = tpu.matmul %3, %4, %cst {dimension_numbers = #tpu.dot_dimension_numbers<[1], [0], [0], [1], [0, 0, 1, 1], [], []>} : vector<16x128xf32>, vector<128x128xf32>, vector<16x128xf32> -> vector<16x128xf32>
    %c0_4 = arith.constant 0 : index
    %c0_5 = arith.constant 0 : index
    %6 = vector.load %arg4[%c0_4, %c0_5] : memref<1x128xf32, #tpu.memory_space<vmem>>, vector<1x128xf32>
    %7 = vector.broadcast %6 : vector<1x128xf32> to vector<16x128xf32>
    %8 = arith.addf %5, %7 : vector<16x128xf32>
    %cst_6 = arith.constant 5.000000e-01 : f32
    %9 = vector.broadcast %cst_6 : f32 to vector<16x128xf32>
    %10 = arith.mulf %9, %8 : vector<16x128xf32>
    %cst_7 = arith.constant 0.707106769 : f32
    %11 = vector.broadcast %cst_7 : f32 to vector<16x128xf32>
    %12 = arith.mulf %8, %11 : vector<16x128xf32>
    %13 = math.absf %12 : vector<16x128xf32>
    %cst_8 = arith.constant 0.327591091 : f32
    %14 = vector.broadcast %cst_8 : f32 to vector<16x128xf32>
    %15 = arith.mulf %14, %13 : vector<16x128xf32>
    %cst_9 = arith.constant 1.000000e+00 : f32
    %16 = vector.broadcast %cst_9 : f32 to vector<16x128xf32>
    %17 = arith.addf %16, %15 : vector<16x128xf32>
    %cst_10 = arith.constant 1.000000e+00 : f32
    %18 = vector.broadcast %cst_10 : f32 to vector<16x128xf32>
    %19 = arith.divf %18, %17 : vector<16x128xf32>
    %cst_11 = arith.constant 1.06140542 : f32
    %20 = vector.broadcast %cst_11 : f32 to vector<16x128xf32>
    %21 = arith.mulf %20, %19 : vector<16x128xf32>
    %cst_12 = arith.constant -1.45315206 : f32
    %22 = vector.broadcast %cst_12 : f32 to vector<16x128xf32>
    %23 = arith.addf %21, %22 : vector<16x128xf32>
    %24 = arith.mulf %23, %19 : vector<16x128xf32>
    %cst_13 = arith.constant 1.42141378 : f32
    %25 = vector.broadcast %cst_13 : f32 to vector<16x128xf32>
    %26 = arith.addf %24, %25 : vector<16x128xf32>
    %27 = arith.mulf %26, %19 : vector<16x128xf32>
    %cst_14 = arith.constant -0.284496725 : f32
    %28 = vector.broadcast %cst_14 : f32 to vector<16x128xf32>
    %29 = arith.addf %27, %28 : vector<16x128xf32>
    %30 = arith.mulf %29, %19 : vector<16x128xf32>
    %cst_15 = arith.constant 0.254829586 : f32
    %31 = vector.broadcast %cst_15 : f32 to vector<16x128xf32>
    %32 = arith.addf %30, %31 : vector<16x128xf32>
    %33 = arith.mulf %32, %19 : vector<16x128xf32>
    %cst_16 = arith.constant 0.000000e+00 : f32
    %34 = vector.broadcast %cst_16 : f32 to vector<16x128xf32>
    %35 = arith.subf %34, %13 : vector<16x128xf32>
    %36 = arith.mulf %35, %13 : vector<16x128xf32>
    %37 = math.exp %36 : vector<16x128xf32>
    %38 = arith.mulf %33, %37 : vector<16x128xf32>
    %cst_17 = arith.constant 1.000000e+00 : f32
    %39 = vector.broadcast %cst_17 : f32 to vector<16x128xf32>
    %40 = arith.subf %39, %38 : vector<16x128xf32>
    %cst_18 = arith.constant 0.000000e+00 : f32
    %41 = vector.broadcast %cst_18 : f32 to vector<16x128xf32>
    %42 = arith.cmpf oge, %12, %41 : vector<16x128xf32>
    %cst_19 = arith.constant 0.000000e+00 : f32
    %43 = vector.broadcast %cst_19 : f32 to vector<16x128xf32>
    %44 = arith.subf %43, %40 : vector<16x128xf32>
    %45 = arith.select %42, %40, %44 : vector<16x128xi1>, vector<16x128xf32>
    %cst_20 = arith.constant 1.000000e+00 : f32
    %46 = vector.broadcast %cst_20 : f32 to vector<16x128xf32>
    %47 = arith.addf %46, %45 : vector<16x128xf32>
    %48 = arith.mulf %10, %47 : vector<16x128xf32>
    %c0_21 = arith.constant 0 : index
    %c0_22 = arith.constant 0 : index
    %49 = vector.load %arg8[%c0_21, %c0_22] : memref<16x128xf32, #tpu.memory_space<vmem>>, vector<16x128xf32>
    %c0_23 = arith.constant 0 : index
    %c0_24 = arith.constant 0 : index
    %50 = vector.load %arg5[%c0_23, %c0_24] : memref<128x128xf32, #tpu.memory_space<vmem>>, vector<128x128xf32>
    %cst_25 = arith.constant dense<0.000000e+00> : vector<16x128xf32>
    %51 = tpu.matmul %48, %50, %cst_25 {dimension_numbers = #tpu.dot_dimension_numbers<[1], [0], [0], [1], [0, 0, 1, 1], [], []>} : vector<16x128xf32>, vector<128x128xf32>, vector<16x128xf32> -> vector<16x128xf32>
    %52 = arith.addf %49, %51 : vector<16x128xf32>
    %c0_26 = arith.constant 0 : index
    %c0_27 = arith.constant 0 : index
    %53 = vector.load %arg8[%c0_26, %c0_27] : memref<16x128xf32, #tpu.memory_space<vmem>>, vector<16x128xf32>
    tpu.vector_store %arg8[%c0_26, %c0_27], %52 {strides = array<i32>} : memref<16x128xf32, #tpu.memory_space<vmem>>, vector<16x128xf32>,
    %c0_i32_28 = arith.constant 0 : i32
    %54 = arith.cmpi eq, %arg1, %c0_i32_28 : i32
    %55 = arith.extui %54 : i1 to i32
    %c0_i32_29 = arith.constant 0 : i32
    %56 = arith.cmpi ne, %55, %c0_i32_29 : i32
    scf.if %56 {
      %c0_30 = arith.constant 0 : index
      %c0_31 = arith.constant 0 : index
      %57 = vector.load %arg8[%c0_30, %c0_31] : memref<16x128xf32, #tpu.memory_space<vmem>>, vector<16x128xf32>
      %c0_32 = arith.constant 0 : index
      %c0_33 = arith.constant 0 : index
      %58 = vector.load %arg7[%c0_32, %c0_33] : memref<16x128xf32, #tpu.memory_space<vmem>>, vector<16x128xf32>
      tpu.vector_store %arg7[%c0_32, %c0_33], %57 {strides = array<i32>} : memref<16x128xf32, #tpu.memory_space<vmem>>, vector<16x128xf32>,
    } else {
    }
    return
  }
  func.func @transform_0(%arg0: i32, %arg1: i32) -> (i32, i32) {
    %c0_i32 = arith.constant 0 : i32
    %c0_i32_0 = arith.constant 0 : i32
    return %arg0, %c0_i32 : i32, i32
  }
  func.func @transform_1(%arg0: i32, %arg1: i32) -> (i32, i32) {
    %c0_i32 = arith.constant 0 : i32
    %c0_i32_0 = arith.constant 0 : i32
    return %c0_i32, %arg1 : i32, i32
  }
  func.func @transform_2(%arg0: i32, %arg1: i32) -> (i32, i32) {
    %c0_i32 = arith.constant 0 : i32
    %c0_i32_0 = arith.constant 0 : i32
    return %c0_i32, %arg1 : i32, i32
  }
  func.func @transform_3(%arg0: i32, %arg1: i32) -> (i32, i32) {
    %c0_i32 = arith.constant 0 : i32
    %c0_i32_0 = arith.constant 0 : i32
    return %arg1, %c0_i32 : i32, i32
  }
  func.func @transform_4(%arg0: i32, %arg1: i32) -> (i32, i32) {
    %c0_i32 = arith.constant 0 : i32
    %c0_i32_0 = arith.constant 0 : i32
    %c0_i32_1 = arith.constant 0 : i32
    return %c0_i32, %c0_i32_0 : i32, i32
  }
  func.func @transform_5(%arg0: i32, %arg1: i32) -> (i32, i32) {
    %c0_i32 = arith.constant 0 : i32
    %c0_i32_0 = arith.constant 0 : i32
    return %arg0, %c0_i32 : i32, i32
  }
}

</mosaic_0001>

<llo_original>
// kernel: ffn_forward.1
$region0: #{ffn_forward.1}
  #allocation0 [shape = 'u32[]', space=smem, size = 0x4, offset = 0x4, fixed_abs, tag = 'smem constant byte address 0x4 - core index']
  #allocation1 [shape = 'u32[144,128]{1,0:T(1,128)}', space=vmem, size = 0x12000, scoped, tag = 'internal scratch']
  #allocation2 [shape = 'f32[16,128]{1,0:T(8,128)}', space=vmem, size = 0x2000, scoped, tag = 'scratch operand']
  %s0 = inlined_call_operand.vmem [shape: f32[16,128], index: 0, kind: input, shape index: {}]
  %s1 = inlined_call_operand.vmem [shape: f32[128,128], index: 1, kind: input, shape index: {}]
  %s2 = inlined_call_operand.vmem [shape: f32[1,128], index: 2, kind: input, shape index: {}]
  %s3 = inlined_call_operand.vmem [shape: f32[128,128], index: 3, kind: input, shape index: {}]
  %s4 = inlined_call_operand.vmem [shape: f32[1,128], index: 4, kind: input, shape index: {}]
  %s5 = inlined_call_operand.vmem [shape: f32[16,128], index: 5, kind: output, shape index: {}]
  %s6 = sld [smem:[#allocation0]]
  $region38: #{ffn_forward.1} parent=0
    _
  %s8 = ssub.s32 1, %s6
  %s9 = scalar_select 0, %s8, %s6
  // Predicated region
  $region2: #{ffn_forward.1} parent=0 // pred_check
    _
  $region3: #{ffn_forward.1} parent=0 // pred_check_branch
    %11 = sbr.rel (0) target = $region5
  $region4: #{ffn_forward.1} parent=0 // pred_region
    _
  $region5: #{ffn_forward.1} parent=0 // pred_fallthru
    _
  // Predicated region
  $region6: #{ffn_forward.1} parent=0 // pred_check
    _
  $region7: #{ffn_forward.1} parent=0 // pred_check_branch
    %13 = sbr.rel (0) target = $region9
  $region8: #{ffn_forward.1} parent=0 // pred_region
    _
  $region9: #{ffn_forward.1} parent=0 // pred_fallthru
    _
  // Predicated region
  $region10: #{ffn_forward.1} parent=0 // pred_check
    _
  $region11: #{ffn_forward.1} parent=0 // pred_check_branch
    %15 = sbr.rel (0) target = $region13
  $region12: #{ffn_forward.1} parent=0 // pred_region
    _
  $region13: #{ffn_forward.1} parent=0 // pred_fallthru
    _
  // Predicated region
  $region14: #{ffn_forward.1} parent=0 // pred_check
    _
  $region15: #{ffn_forward.1} parent=0 // pred_check_branch
    %17 = sbr.rel (0) target = $region17
  $region16: #{ffn_forward.1} parent=0 // pred_region
    _
  $region17: #{ffn_forward.1} parent=0 // pred_fallthru
    _
  // Predicated region
  $region18: #{ffn_forward.1} parent=0 // pred_check
    _
  $region19: #{ffn_forward.1} parent=0 // pred_check_branch
    %19 = sbr.rel (0) target = $region21
  $region20: #{ffn_forward.1} parent=0 // pred_region
    _
  $region21: #{ffn_forward.1} parent=0 // pred_fallthru
    _
  %p20 = scmp.eq.s32.totalorder 0, 0
  // Predicated region
  $region22: #{ffn_forward.1} parent=0 // pred_check
    %p21 = pneg %p20
  $region23: #{ffn_forward.1} parent=0 // pred_check_branch
    %23 = sbr.rel (%p21) target = $region25
  $region24: #{ffn_forward.1} parent=0 // pred_region
    %v24 = vld [vmem:[%s4] sm:$0x1]
    %v26 = vlaneseq
    %v27 = vshrl.u32 %v26, 7
    %v28 = vsub.s32 0, %v27
    %v29 = vrot.slane %v24, %v28
    %31 = vst [vmem:[#allocation2] sm:$0xff] %v29
    %32 = vst [vmem:[#allocation2 + $0x8] sm:$0xff] %v29
  $region25: #{ffn_forward.1} parent=0 // pred_fallthru
    _
  %v33 = vld [vmem:[%s0] sm:$0xff]
  %v34 = vld [vmem:[%s0 + $0x8] sm:$0xff]
  %v35 = vld [vmem:[%s1] sm:$0xff]
  %v36 = vld [vmem:[%s1 + $0x8] sm:$0xff]
  %v37 = vld [vmem:[%s1 + $0x10] sm:$0xff]
  %v38 = vld [vmem:[%s1 + $0x18] sm:$0xff]
  %v39 = vld [vmem:[%s1 + $0x20] sm:$0xff]
  %v40 = vld [vmem:[%s1 + $0x28] sm:$0xff]
  %v41 = vld [vmem:[%s1 + $0x30] sm:$0xff]
  %v42 = vld [vmem:[%s1 + $0x38] sm:$0xff]
  %v43 = vld [vmem:[%s1 + $0x40] sm:$0xff]
  %v44 = vld [vmem:[%s1 + $0x48] sm:$0xff]
  %v45 = vld [vmem:[%s1 + $0x50] sm:$0xff]
  %v46 = vld [vmem:[%s1 + $0x58] sm:$0xff]
  %v47 = vld [vmem:[%s1 + $0x60] sm:$0xff]
  %v48 = vld [vmem:[%s1 + $0x68] sm:$0xff]
  %v49 = vld [vmem:[%s1 + $0x70] sm:$0xff]
  %v50 = vld [vmem:[%s1 + $0x78] sm:$0xff]
  %v51 = vld [vmem:[%s2] sm:$0x1]
  %v53 = vlaneseq
  %v54 = vshrl.u32 %v53, 7
  %v55 = vsub.s32 0, %v54
  %v56 = vrot.slane %v51, %v55
  %58 = vmatprep.subr.mxu0 0.0
  %59 = vmatpush1.msra.mxu0 %v50
  %60 = vmatprep.subr.mxu0 0.0
  %61 = vmatpush1.msra.mxu0 %v49
  %62 = vmatprep.subr.mxu0 0.0
  %63 = vmatpush1.msra.mxu0 %v48
  %64 = vmatprep.subr.mxu0 0.0
  %65 = vmatpush1.msra.mxu0 %v47
  %66 = vmatprep.subr.mxu0 0.0
  %67 = vmatpush1.msra.mxu0 %v46
  %68 = vmatprep.subr.mxu0 0.0
  %69 = vmatpush1.msra.mxu0 %v45
  %70 = vmatprep.subr.mxu0 0.0
  %71 = vmatpush1.msra.mxu0 %v44
  %72 = vmatprep.subr.mxu0 0.0
  %73 = vmatpush1.msra.mxu0 %v43
  %74 = vmatprep.subr.mxu0 0.0
  %75 = vmatpush1.msra.mxu0 %v42
  %76 = vmatprep.subr.mxu0 0.0
  %77 = vmatpush1.msra.mxu0 %v41
  %78 = vmatprep.subr.mxu0 0.0
  %79 = vmatpush1.msra.mxu0 %v40
  %80 = vmatprep.subr.mxu0 0.0
  %81 = vmatpush1.msra.mxu0 %v39
  %82 = vmatprep.subr.mxu0 0.0
  %83 = vmatpush1.msra.mxu0 %v38
  %84 = vmatprep.subr.mxu0 0.0
  %85 = vmatpush1.msra.mxu0 %v37
  %86 = vmatprep.subr.mxu0 0.0
  %87 = vmatpush1.msra.mxu0 %v36
  %88 = vmatprep.subr.mxu0 0.0
  %89 = vmatpush1.msra.mxu0 %v35
  %90 = vmatprep.subr.mxu0 0.0
  %91 = vmatpush2.msra.mxu0 0.0
  %92 = vmatprep.subr.mxu0 0.0
  %93 = vmatpush2.msra.mxu0 0.0
  %94 = vmatprep.subr.mxu0 0.0
  %95 = vmatpush2.msra.mxu0 0.0
  %96 = vmatprep.subr.mxu0 0.0
  %97 = vmatpush2.msra.mxu0 0.0
  %98 = vmatprep.subr.mxu0 0.0
  %99 = vmatpush2.msra.mxu0 0.0
  %100 = vmatprep.subr.mxu0 0.0
  %101 = vmatpush2.msra.mxu0 0.0
  %102 = vmatprep.subr.mxu0 0.0
  %103 = vmatpush2.msra.mxu0 0.0
  %104 = vmatprep.subr.mxu0 0.0
  %105 = vmatpush2.msra.mxu0 0.0
  %106 = vmatprep.subr.mxu0 0.0
  %107 = vmatpush2.msra.mxu0 0.0
  %108 = vmatprep.subr.mxu0 0.0
  %109 = vmatpush2.msra.mxu0 0.0
  %110 = vmatprep.subr.mxu0 0.0
  %111 = vmatpush2.msra.mxu0 0.0
  %112 = vmatprep.subr.mxu0 0.0
  %113 = vmatpush2.msra.mxu0 0.0
  %114 = vmatprep.subr.mxu0 0.0
  %115 = vmatpush2.msra.mxu0 0.0
  %116 = vmatprep.subr.mxu0 0.0
  %117 = vmatpush2.msra.mxu0 0.0
  %118 = vmatprep.subr.mxu0 0.0
  %119 = vmatpush2.msra.mxu0 0.0
  %120 = vmatprep.subr.mxu0 0.0
  %121 = vmatpush2.msra.mxu0 0.0
  %122 = vmatprep.mubr.f32.mxu0 0.0
  %123 = vmatmul.mubr.f32.gmra.mxu0 %v33
  %v124 = vpop.f32.mrf.mxu0
  %v125 = vadd.f32 %v56, %v124
  %v126 = vpop.f32.mrf.mxu0
  %127 = vmatprep.mubr.f32.mxu0 0.0
  %128 = vmatmul.mubr.f32.gmra.mxu0 %v34
  %v129 = vpop.f32.mrf.mxu0
  %v130 = vadd.f32 %v56, %v129
  %v131 = vpop.f32.mrf.mxu0
  %132 = vdwg.mxu0
  %v133 = vmul.f32 %v125, 0.5
  %v134 = vmul.f32 %v130, 0.5
  %v135 = vmul.f32 %v125, 0.70710677
  %v136 = vmul.f32 %v130, 0.70710677
  %v137 = vand.u32 2147483647, %v135
  %v138 = vand.u32 2147483647, %v136
  %v139 = vmul.f32 %v137, 0.3275911
  %v140 = vmul.f32 %v138, 0.3275911
  %v141 = vadd.f32 %v139, 1.0
  %v142 = vadd.f32 %v140, 1.0
  %v143 = vrcp.pop %v141
  %v144 = vmul.f32 1.0, %v143
  %v145 = vrcp.pop %v142
  %v146 = vmul.f32 1.0, %v145
  %v147 = vmul.f32 %v144, 1.0614054
  %v148 = vmul.f32 %v146, 1.0614054
  %v149 = vadd.f32 %v147, -1.4531521
  %v150 = vadd.f32 %v148, -1.4531521
  %v151 = vmul.f32 %v149, %v144
  %v152 = vmul.f32 %v150, %v146
  %v153 = vadd.f32 %v151, 1.4214138
  %v154 = vadd.f32 %v152, 1.4214138
  %v155 = vmul.f32 %v153, %v144
  %v156 = vmul.f32 %v154, %v146
  %v157 = vadd.f32 %v155, -0.28449672
  %v158 = vadd.f32 %v156, -0.28449672
  %v159 = vmul.f32 %v157, %v144
  %v160 = vmul.f32 %v158, %v146
  %v161 = vadd.f32 %v159, 0.2548296
  %v162 = vadd.f32 %v160, 0.2548296
  %v163 = vmul.f32 %v161, %v144
  %v164 = vmul.f32 %v162, %v146
  %v165 = vsub.f32 0.0, %v137
  %v166 = vsub.f32 0.0, %v138
  %v167 = vmul.f32 %v165, %v137
  %v168 = vmul.f32 %v166, %v138
  %v169 = vmul.f32 %v167, 1.442695
  %v170 = vpow.pop %v169
  %v171 = vmul.f32 %v168, 1.442695
  %v172 = vpow.pop %v171
  %v173 = vmul.f32 %v163, %v170
  %v174 = vmul.f32 %v164, %v172
  %v175 = vsub.f32 1.0, %v173
  %v176 = vsub.f32 1.0, %v174
  %vm177 = vcmp.ge.f32.partialorder %v135, 0.0
  %vm178 = vcmp.ge.f32.partialorder %v136, 0.0
  %v179 = vsub.f32 0.0, %v175
  %v180 = vsub.f32 0.0, %v176
  %v181 = vsel %vm177, %v175, %v179
  %v182 = vsel %vm178, %v176, %v180
  %v183 = vadd.f32 %v181, 1.0
  %v184 = vadd.f32 %v182, 1.0
  %v185 = vmul.f32 %v133, %v183
  %v186 = vmul.f32 %v134, %v184
  %v187 = vld [vmem:[#allocation2] sm:$0xff]
  %v188 = vld [vmem:[#allocation2 + $0x8] sm:$0xff]
  %v189 = vld [vmem:[%s3] sm:$0xff]
  %v190 = vld [vmem:[%s3 + $0x8] sm:$0xff]
  %v191 = vld [vmem:[%s3 + $0x10] sm:$0xff]
  %v192 = vld [vmem:[%s3 + $0x18] sm:$0xff]
  %v193 = vld [vmem:[%s3 + $0x20] sm:$0xff]
  %v194 = vld [vmem:[%s3 + $0x28] sm:$0xff]
  %v195 = vld [vmem:[%s3 + $0x30] sm:$0xff]
  %v196 = vld [vmem:[%s3 + $0x38] sm:$0xff]
  %v197 = vld [vmem:[%s3 + $0x40] sm:$0xff]
  %v198 = vld [vmem:[%s3 + $0x48] sm:$0xff]
  %v199 = vld [vmem:[%s3 + $0x50] sm:$0xff]
  %v200 = vld [vmem:[%s3 + $0x58] sm:$0xff]
  %v201 = vld [vmem:[%s3 + $0x60] sm:$0xff]
  %v202 = vld [vmem:[%s3 + $0x68] sm:$0xff]
  %v203 = vld [vmem:[%s3 + $0x70] sm:$0xff]
  %v204 = vld [vmem:[%s3 + $0x78] sm:$0xff]
  %205 = vmatprep.subr.mxu0 0.0
  %206 = vmatpush1.msra.mxu0 %v204
  %207 = vmatprep.subr.mxu0 0.0
  %208 = vmatpush1.msra.mxu0 %v203
  %209 = vmatprep.subr.mxu0 0.0
  %210 = vmatpush1.msra.mxu0 %v202
  %211 = vmatprep.subr.mxu0 0.0
  %212 = vmatpush1.msra.mxu0 %v201
  %213 = vmatprep.subr.mxu0 0.0
  %214 = vmatpush1.msra.mxu0 %v200
  %215 = vmatprep.subr.mxu0 0.0
  %216 = vmatpush1.msra.mxu0 %v199
  %217 = vmatprep.subr.mxu0 0.0
  %218 = vmatpush1.msra.mxu0 %v198
  %219 = vmatprep.subr.mxu0 0.0
  %220 = vmatpush1.msra.mxu0 %v197
  %221 = vmatprep.subr.mxu0 0.0
  %222 = vmatpush1.msra.mxu0 %v196
  %223 = vmatprep.subr.mxu0 0.0
  %224 = vmatpush1.msra.mxu0 %v195
  %225 = vmatprep.subr.mxu0 0.0
  %226 = vmatpush1.msra.mxu0 %v194
  %227 = vmatprep.subr.mxu0 0.0
  %228 = vmatpush1.msra.mxu0 %v193
  %229 = vmatprep.subr.mxu0 0.0
  %230 = vmatpush1.msra.mxu0 %v192
  %231 = vmatprep.subr.mxu0 0.0
  %232 = vmatpush1.msra.mxu0 %v191
  %233 = vmatprep.subr.mxu0 0.0
  %234 = vmatpush1.msra.mxu0 %v190
  %235 = vmatprep.subr.mxu0 0.0
  %236 = vmatpush1.msra.mxu0 %v189
  %237 = vmatprep.subr.mxu0 0.0
  %238 = vmatpush2.msra.mxu0 0.0
  %239 = vmatprep.subr.mxu0 0.0
  %240 = vmatpush2.msra.mxu0 0.0
  %241 = vmatprep.subr.mxu0 0.0
  %242 = vmatpush2.msra.mxu0 0.0
  %243 = vmatprep.subr.mxu0 0.0
  %244 = vmatpush2.msra.mxu0 0.0
  %245 = vmatprep.subr.mxu0 0.0
  %246 = vmatpush2.msra.mxu0 0.0
  %247 = vmatprep.subr.mxu0 0.0
  %248 = vmatpush2.msra.mxu0 0.0
  %249 = vmatprep.subr.mxu0 0.0
  %250 = vmatpush2.msra.mxu0 0.0
  %251 = vmatprep.subr.mxu0 0.0
  %252 = vmatpush2.msra.mxu0 0.0
  %253 = vmatprep.subr.mxu0 0.0
  %254 = vmatpush2.msra.mxu0 0.0
  %255 = vmatprep.subr.mxu0 0.0
  %256 = vmatpush2.msra.mxu0 0.0
  %257 = vmatprep.subr.mxu0 0.0
  %258 = vmatpush2.msra.mxu0 0.0
  %259 = vmatprep.subr.mxu0 0.0
  %260 = vmatpush2.msra.mxu0 0.0
  %261 = vmatprep.subr.mxu0 0.0
  %262 = vmatpush2.msra.mxu0 0.0
  %263 = vmatprep.subr.mxu0 0.0
  %264 = vmatpush2.msra.mxu0 0.0
  %265 = vmatprep.subr.mxu0 0.0
  %266 = vmatpush2.msra.mxu0 0.0
  %267 = vmatprep.subr.mxu0 0.0
  %268 = vmatpush2.msra.mxu0 0.0
  %269 = vmatprep.mubr.f32.mxu0 0.0
  %270 = vmatmul.mubr.f32.gmra.mxu0 %v185
  %v271 = vpop.f32.mrf.mxu0
  %v272 = vadd.f32 0.0, %v271
  %v273 = vpop.f32.mrf.mxu0
  %274 = vmatprep.mubr.f32.mxu0 0.0
  %275 = vmatmul.mubr.f32.gmra.mxu0 %v186
  %v276 = vpop.f32.mrf.mxu0
  %v277 = vadd.f32 0.0, %v276
  %v278 = vpop.f32.mrf.mxu0
  %279 = vdwg.mxu0
  %v280 = vadd.f32 %v187, %v272
  %v281 = vadd.f32 %v188, %v277
  %282 = vst [vmem:[#allocation2] sm:$0xff] %v280
  %283 = vst [vmem:[#allocation2 + $0x8] sm:$0xff] %v281
  // Predicated region
  $region26: #{ffn_forward.1} parent=0 // pred_check
    %p284 = pneg %p20
  $region27: #{ffn_forward.1} parent=0 // pred_check_branch
    %286 = sbr.rel (%p284) target = $region29
  $region28: #{ffn_forward.1} parent=0 // pred_region
    %v287 = vld [vmem:[#allocation2] sm:$0xff]
    %v288 = vld [vmem:[#allocation2 + $0x8] sm:$0xff]
    %289 = vst [vmem:[%s5] sm:$0xff] %v287
    %290 = vst [vmem:[%s5 + $0x8] sm:$0xff] %v288
  $region29: #{ffn_forward.1} parent=0 // pred_fallthru
    _
  // Predicated region
  $region30: #{ffn_forward.1} parent=0 // pred_check
    _
  $region31: #{ffn_forward.1} parent=0 // pred_check_branch
    %292 = sbr.rel (0) target = $region33
  $region32: #{ffn_forward.1} parent=0 // pred_region
    _
  $region33: #{ffn_forward.1} parent=0 // pred_fallthru
    _
  // Predicated region
  $region34: #{ffn_forward.1} parent=0 // pred_check
    _
  $region35: #{ffn_forward.1} parent=0 // pred_check_branch
    %294 = sbr.rel (0) target = $region37
  $region36: #{ffn_forward.1} parent=0 // pred_region
    _
  $region37: #{ffn_forward.1} parent=0 // pred_fallthru
    _

</llo_original>
